<compile_context>
chip_gen: v7x
topology: tpu7x:2x2x1
jax: 0.10.0
libtpu: 0.0.40
codegen_flags: <defaults>
</compile_context>

<pallas_src>
from functools import partial

import jax
import jax.numpy as jnp
from jax.experimental import pallas as pl
from jax.experimental.pallas import tpu as pltpu


def _attention_block_kernel(x_ref, wqkv_ref, bqkv_ref, wp_ref, bp_ref,
                            gamma_ref, beta_ref, pavg_ref, o_ref):
    # x_ref    : (1, C, N)   one batch element, spatial positions on lanes
    # wqkv_ref : (3C, C)     stacked [Wq*scale ; Wk ; Wv]  (C_out, C_in)
    # bqkv_ref : (3C, 1)     stacked [bq*scale ; bk ; bv]
    # wp_ref   : (C, C)      output projection
    # bp_ref   : (C, 1)
    # gamma_ref: (C, 1)      GroupNorm affine scale
    # beta_ref : (C, 1)      GroupNorm affine shift
    # pavg_ref : (C, C)      group-averaging matrix  P[i,j] = [grp(i)==grp(j)]/cnt
    # o_ref    : (1, C, N)
    c = wp_ref.shape[0]
    w_dtype = wqkv_ref.dtype

    x = x_ref[0]
    xf = x.astype(jnp.float32)                         # (C, N)

    # ---- GroupNorm(8, eps=1e-6), one-pass biased stats (f32) ----
    s1 = jnp.sum(xf, axis=1, keepdims=True)            # (C, 1)  sum x
    s2 = jnp.sum(xf * xf, axis=1, keepdims=True)       # (C, 1)  sum x^2
    mean_c = jnp.dot(pavg_ref[...], s1, preferred_element_type=jnp.float32)
    ex2_c = jnp.dot(pavg_ref[...], s2, preferred_element_type=jnp.float32)
    var_c = ex2_c - mean_c * mean_c
    xn = ((xf - mean_c) * jax.lax.rsqrt(var_c + 1e-6)
          * gamma_ref[...].astype(jnp.float32)
          + beta_ref[...].astype(jnp.float32))         # (C, N)

    # ---- fused Q/K/V: one (3C,C)@(C,N) MXU matmul, f32 accumulation ----
    qkv = (jnp.dot(wqkv_ref[...], xn.astype(w_dtype),
                   preferred_element_type=jnp.float32)
           + bqkv_ref[...].astype(jnp.float32))        # (3C, N)
    q = qkv[0:c]          # scale C**-0.5 already folded into Wq / bq
    k = qkv[c:2 * c]
    v = qkv[2 * c:3 * c]

    # ---- attention: scores transposed so softmax reductions give (1, Nq) ----
    # s_t[j, i] = sum_c k[c, j] * q[c, i]
    s_t = jax.lax.dot_general(k.astype(w_dtype), q.astype(w_dtype),
                              (((0,), (0,)), ((), ())),
                              preferred_element_type=jnp.float32)   # (Nk, Nq)
    m = jnp.max(s_t, axis=0, keepdims=True)            # (1, Nq)
    p_t = jnp.exp(s_t - m)                              # (Nk, Nq)
    denom = jnp.sum(p_t, axis=0, keepdims=True)         # (1, Nq)

    # deferred normalization: unnormalized (C,Nq) = V @ P_t, then EUP recip
    out_un = jnp.dot(v.astype(w_dtype), p_t.astype(w_dtype),
                     preferred_element_type=jnp.float32)            # (C, Nq)
    inv = pl.reciprocal(denom, approx=True)             # (1, Nq), EUP
    h = (out_un * inv).astype(w_dtype)                  # (C, Nq)

    # ---- output projection + residual ----
    y = (jnp.dot(wp_ref[...], h, preferred_element_type=jnp.float32)
         + bp_ref[...].astype(jnp.float32))             # (C, N)
    o_ref[0] = (xf + y).astype(o_ref.dtype)


@partial(jax.jit, static_argnames=("num_groups",))
def attention_block_forward(x_ncdhw, gamma, beta,
                            wq, bq, wk, bk, wv, bv, wp, bp,
                            num_groups=8):
    """Equivalent of AttentionBlock.forward for NCDHW input.

    Conv3d 1x1x1 weights are given in PyTorch layout (C_out, C_in, 1, 1, 1).
    """
    n, c, d, h, w = x_ncdhw.shape
    assert c % num_groups == 0, "channels must be divisible by num_groups"
    npos = d * h * w
    cnt = npos * (c // num_groups)      # elements per (batch, group)

    # NCDHW -> (n, C, N): pure reshape (contiguous), NO HBM transpose.
    xf = x_ncdhw.reshape(n, c, npos)

    # In a real model the weight packing below is done once at load time;
    # under jit it constant-folds / fuses and is negligible at these sizes.
    scale = c ** (-0.5)

    def prep_w(wt):
        return wt.reshape(c, c)          # (C_out, C_in): used as W @ x directly

    w_qkv = jnp.concatenate([prep_w(wq) * scale, prep_w(wk), prep_w(wv)],
                            axis=0)                              # (3C, C)
    b_qkv = jnp.concatenate([bq * scale, bk, bv]).reshape(3 * c, 1)
    w_p = prep_w(wp)                                             # (C, C)
    b_p = bp.reshape(c, 1)
    gamma2 = gamma.reshape(c, 1)
    beta2 = beta.reshape(c, 1)

    # Group-averaging matrix (f32 for exact statistics regardless of dtype).
    grp = jnp.arange(c) // (c // num_groups)
    pavg = (grp[:, None] == grp[None, :]).astype(jnp.float32) / float(cnt)

    # Scoped-VMEM budget sized to the fused working set (v5e default is 16MiB).
    est = 4 * (
        4 * c * npos                      # double-buffered x / out blocks
        + 2 * (4 * c * c + 8 * c)         # weights, bias, affine, P (x2 bufs)
        + 8 * c * npos                    # xn, qkv, out_un, residual temps
        + 2 * npos * npos                 # score matrix + exp
    )
    vmem_limit = int(min(max(2 * est, 32 * 1024 * 1024), 128 * 1024 * 1024))

    out = pl.pallas_call(
        _attention_block_kernel,
        out_shape=jax.ShapeDtypeStruct((n, c, npos), x_ncdhw.dtype),
        grid_spec=pltpu.PrefetchScalarGridSpec(
            num_scalar_prefetch=0,
            grid=(n,),
            in_specs=[
                pl.BlockSpec((1, c, npos), lambda b: (b, 0, 0)),
                # constant index_maps: params stay VMEM-resident across grid
                pl.BlockSpec((3 * c, c), lambda b: (0, 0)),
                pl.BlockSpec((3 * c, 1), lambda b: (0, 0)),
                pl.BlockSpec((c, c), lambda b: (0, 0)),
                pl.BlockSpec((c, 1), lambda b: (0, 0)),
                pl.BlockSpec((c, 1), lambda b: (0, 0)),
                pl.BlockSpec((c, 1), lambda b: (0, 0)),
                pl.BlockSpec((c, c), lambda b: (0, 0)),
            ],
            out_specs=pl.BlockSpec((1, c, npos), lambda b: (b, 0, 0)),
        ),
        compiler_params=pltpu.CompilerParams(
            dimension_semantics=("parallel",),
            vmem_limit_bytes=vmem_limit),
    )(xf, w_qkv, b_qkv, w_p, b_p, gamma2, beta2, pavg)

    # (n, C, N) -> NCDHW: pure reshape, no transpose.
    return out.reshape(n, c, d, h, w)


def _reference_attention_block(x, gamma, beta,
                               wq, bq, wk, bk, wv, bv, wp, bp,
                               num_groups=8, eps=1e-6):
    """Pure-JAX reference of AttentionBlock.forward (NCDHW)."""
    n, c, d, h, w = x.shape
    hp = jax.lax.Precision.HIGHEST

    xg = x.reshape(n, num_groups, c // num_groups, d, h, w)
    mean = xg.mean(axis=(2, 3, 4, 5), keepdims=True)
    var = xg.var(axis=(2, 3, 4, 5), keepdims=True)
    xn = ((xg - mean) / jnp.sqrt(var + eps)).reshape(n, c, d, h, w)
    xn = xn * gamma.reshape(1, c, 1, 1, 1) + beta.reshape(1, c, 1, 1, 1)

    def conv1(inp, wt, bt):
        w2 = wt.reshape(c, c)   # (C_out, C_in)
        return (jnp.einsum('oc,ncdhw->nodhw', w2, inp, precision=hp)
                + bt.reshape(1, c, 1, 1, 1))

    q = conv1(xn, wq, bq)
    k = conv1(xn, wk, bk)
    v = conv1(xn, wv, bv)

    npos = d * h * w
    qf = q.reshape(n, c, npos)
    kf = k.reshape(n, c, npos)
    vf = v.reshape(n, c, npos)
    attn = jnp.einsum('bci,bcj->bij', qf, kf, precision=hp) * (c ** -0.5)
    attn = jax.nn.softmax(attn, axis=2)
    out = jnp.einsum('bij,bcj->bci', attn, vf, precision=hp)
    out = out.reshape(n, c, d, h, w)
    out = conv1(out, wp, bp)
    return x + out


if __name__ == "__main__":
    key = jax.random.PRNGKey(0)
    keys = jax.random.split(key, 12)

    batch, channels, spatial = 2, 16, 4            # C divisible by 8 groups
    x = jax.random.normal(
        keys[0], (batch, channels, spatial, spatial, spatial),
        dtype=jnp.float32)

    # GroupNorm affine params
    gamma = 1.0 + 0.1 * jax.random.normal(keys[1], (channels,), dtype=jnp.float32)
    beta = 0.1 * jax.random.normal(keys[2], (channels,), dtype=jnp.float32)

    # Conv3d(C, C, 1) params, PyTorch-default-like uniform init
    fan_in = channels
    bound = 1.0 / (fan_in ** 0.5)

    def conv_params(kw, kb):
        wt = jax.random.uniform(kw, (channels, channels, 1, 1, 1),
                                minval=-bound, maxval=bound, dtype=jnp.float32)
        bt = jax.random.uniform(kb, (channels,),
                                minval=-bound, maxval=bound, dtype=jnp.float32)
        return wt, bt

    wq, bq = conv_params(keys[3], keys[4])
    wk, bk = conv_params(keys[5], keys[6])
    wv, bv = conv_params(keys[7], keys[8])
    wp, bp = conv_params(keys[9], keys[10])

    out = attention_block_forward(x, gamma, beta, wq, bq, wk, bk, wv, bv, wp, bp)
    out = jax.block_until_ready(out)

    ref = _reference_attention_block(x, gamma, beta,
                                     wq, bq, wk, bk, wv, bv, wp, bp)

    assert out.shape == x.shape and ref.shape == x.shape
    if not jnp.allclose(out, ref, rtol=1e-2, atol=1e-2):
        raise AssertionError(
            f"mismatch, max abs err = {float(jnp.max(jnp.abs(out - ref)))}")
    print("KERNEL_OK")
</pallas_src>

<mosaic_0001>
module attributes {stable_mosaic.version = 11 : i64} {
  func.func @_attention_block_kernel(%arg0: i32, %arg1: memref<1x16x64xf32, #tpu.memory_space<vmem>>, %arg2: memref<48x16xf32, #tpu.memory_space<vmem>>, %arg3: memref<48x1xf32, #tpu.memory_space<vmem>>, %arg4: memref<16x16xf32, #tpu.memory_space<vmem>>, %arg5: memref<16x1xf32, #tpu.memory_space<vmem>>, %arg6: memref<16x1xf32, #tpu.memory_space<vmem>>, %arg7: memref<16x1xf32, #tpu.memory_space<vmem>>, %arg8: memref<16x16xf32, #tpu.memory_space<vmem>>, %arg9: memref<1x16x64xf32, #tpu.memory_space<vmem>>) attributes {dimension_semantics = [#tpu.dimension_semantics<parallel>], iteration_bounds = array<i64: 2>, scalar_prefetch = 0 : i64, scratch_operands = 0 : i64, tpu.core_type = #tpu.core_type<tc>, window_params = [{transform_indices = @transform_0, window_bounds = array<i64: 1, 16, 64>}, {pipeline_mode = #tpu.pipeline_mode<synchronous>, transform_indices = @transform_1, window_bounds = array<i64: 48, 16>}, {pipeline_mode = #tpu.pipeline_mode<synchronous>, transform_indices = @transform_2, window_bounds = array<i64: 48, 1>}, {pipeline_mode = #tpu.pipeline_mode<synchronous>, transform_indices = @transform_3, window_bounds = array<i64: 16, 16>}, {pipeline_mode = #tpu.pipeline_mode<synchronous>, transform_indices = @transform_4, window_bounds = array<i64: 16, 1>}, {pipeline_mode = #tpu.pipeline_mode<synchronous>, transform_indices = @transform_5, window_bounds = array<i64: 16, 1>}, {pipeline_mode = #tpu.pipeline_mode<synchronous>, transform_indices = @transform_6, window_bounds = array<i64: 16, 1>}, {pipeline_mode = #tpu.pipeline_mode<synchronous>, transform_indices = @transform_7, window_bounds = array<i64: 16, 16>}, {transform_indices = @transform_8, window_bounds = array<i64: 1, 16, 64>}]} {
    %c0 = arith.constant 0 : index
    %c0_0 = arith.constant 0 : index
    %c0_1 = arith.constant 0 : index
    %0 = vector.load %arg1[%c0, %c0_0, %c0_1] : memref<1x16x64xf32, #tpu.memory_space<vmem>>, vector<1x16x64xf32>
    %1 = vector.shape_cast %0 : vector<1x16x64xf32> to vector<16x64xf32>
    %cst = arith.constant dense<0.000000e+00> : vector<16xf32>
    %2 = vector.multi_reduction <add>, %1, %cst [1] : vector<16x64xf32> to vector<16xf32>
    %3 = vector.shape_cast %2 : vector<16xf32> to vector<16x1xf32>
    %4 = arith.mulf %1, %1 : vector<16x64xf32>
    %cst_2 = arith.constant dense<0.000000e+00> : vector<16xf32>
    %5 = vector.multi_reduction <add>, %4, %cst_2 [1] : vector<16x64xf32> to vector<16xf32>
    %6 = vector.shape_cast %5 : vector<16xf32> to vector<16x1xf32>
    %c0_3 = arith.constant 0 : index
    %c0_4 = arith.constant 0 : index
    %7 = vector.load %arg8[%c0_3, %c0_4] : memref<16x16xf32, #tpu.memory_space<vmem>>, vector<16x16xf32>
    %cst_5 = arith.constant dense<0.000000e+00> : vector<16x1xf32>
    %8 = tpu.matmul %7, %3, %cst_5 {dimension_numbers = #tpu.dot_dimension_numbers<[1], [0], [0], [1], [0, 0, 1, 1], [], []>} : vector<16x16xf32>, vector<16x1xf32>, vector<16x1xf32> -> vector<16x1xf32>
    %c0_6 = arith.constant 0 : index
    %c0_7 = arith.constant 0 : index
    %9 = vector.load %arg8[%c0_6, %c0_7] : memref<16x16xf32, #tpu.memory_space<vmem>>, vector<16x16xf32>
    %cst_8 = arith.constant dense<0.000000e+00> : vector<16x1xf32>
    %10 = tpu.matmul %9, %6, %cst_8 {dimension_numbers = #tpu.dot_dimension_numbers<[1], [0], [0], [1], [0, 0, 1, 1], [], []>} : vector<16x16xf32>, vector<16x1xf32>, vector<16x1xf32> -> vector<16x1xf32>
    %11 = arith.mulf %8, %8 : vector<16x1xf32>
    %12 = arith.subf %10, %11 : vector<16x1xf32>
    %13 = vector.broadcast %8 : vector<16x1xf32> to vector<16x64xf32>
    %14 = arith.subf %1, %13 : vector<16x64xf32>
    %cst_9 = arith.constant 9.99999997E-7 : f32
    %15 = vector.broadcast %cst_9 : f32 to vector<16x1xf32>
    %16 = arith.addf %12, %15 : vector<16x1xf32>
    %17 = math.rsqrt %16 : vector<16x1xf32>
    %18 = vector.broadcast %17 : vector<16x1xf32> to vector<16x64xf32>
    %19 = arith.mulf %14, %18 : vector<16x64xf32>
    %c0_10 = arith.constant 0 : index
    %c0_11 = arith.constant 0 : index
    %20 = vector.load %arg6[%c0_10, %c0_11] : memref<16x1xf32, #tpu.memory_space<vmem>>, vector<16x1xf32>
    %21 = vector.broadcast %20 : vector<16x1xf32> to vector<16x64xf32>
    %22 = arith.mulf %19, %21 : vector<16x64xf32>
    %c0_12 = arith.constant 0 : index
    %c0_13 = arith.constant 0 : index
    %23 = vector.load %arg7[%c0_12, %c0_13] : memref<16x1xf32, #tpu.memory_space<vmem>>, vector<16x1xf32>
    %24 = vector.broadcast %23 : vector<16x1xf32> to vector<16x64xf32>
    %25 = arith.addf %22, %24 : vector<16x64xf32>
    %c0_14 = arith.constant 0 : index
    %c0_15 = arith.constant 0 : index
    %26 = vector.load %arg2[%c0_14, %c0_15] : memref<48x16xf32, #tpu.memory_space<vmem>>, vector<48x16xf32>
    %cst_16 = arith.constant dense<0.000000e+00> : vector<48x64xf32>
    %27 = tpu.matmul %26, %25, %cst_16 {dimension_numbers = #tpu.dot_dimension_numbers<[1], [0], [0], [1], [0, 0, 1, 1], [], []>} : vector<48x16xf32>, vector<16x64xf32>, vector<48x64xf32> -> vector<48x64xf32>
    %c0_17 = arith.constant 0 : index
    %c0_18 = arith.constant 0 : index
    %28 = vector.load %arg3[%c0_17, %c0_18] : memref<48x1xf32, #tpu.memory_space<vmem>>, vector<48x1xf32>
    %29 = vector.broadcast %28 : vector<48x1xf32> to vector<48x64xf32>
    %30 = arith.addf %27, %29 : vector<48x64xf32>
    %31 = vector.extract_strided_slice %30 {offsets = [0, 0], sizes = [16, 64], strides = [1, 1]} : vector<48x64xf32> to vector<16x64xf32>
    %32 = vector.extract_strided_slice %30 {offsets = [16, 0], sizes = [16, 64], strides = [1, 1]} : vector<48x64xf32> to vector<16x64xf32>
    %33 = vector.extract_strided_slice %30 {offsets = [32, 0], sizes = [16, 64], strides = [1, 1]} : vector<48x64xf32> to vector<16x64xf32>
    %cst_19 = arith.constant dense<0.000000e+00> : vector<64x64xf32>
    %34 = tpu.matmul %32, %31, %cst_19 {dimension_numbers = #tpu.dot_dimension_numbers<[0], [0], [1], [1], [0, 1, 1, 1], [], []>} : vector<16x64xf32>, vector<16x64xf32>, vector<64x64xf32> -> vector<64x64xf32>
    %cst_20 = arith.constant dense<0xFF800000> : vector<64xf32>
    %35 = vector.multi_reduction <maximumf>, %34, %cst_20 [0] : vector<64x64xf32> to vector<64xf32>
    %36 = vector.shape_cast %35 : vector<64xf32> to vector<1x64xf32>
    %37 = vector.broadcast %36 : vector<1x64xf32> to vector<64x64xf32>
    %38 = arith.subf %34, %37 : vector<64x64xf32>
    %39 = math.exp %38 : vector<64x64xf32>
    %cst_21 = arith.constant dense<0.000000e+00> : vector<64xf32>
    %40 = vector.multi_reduction <add>, %39, %cst_21 [0] : vector<64x64xf32> to vector<64xf32>
    %41 = vector.shape_cast %40 : vector<64xf32> to vector<1x64xf32>
    %cst_22 = arith.constant dense<0.000000e+00> : vector<16x64xf32>
    %42 = tpu.matmul %33, %39, %cst_22 {dimension_numbers = #tpu.dot_dimension_numbers<[1], [0], [0], [1], [0, 0, 1, 1], [], []>} : vector<16x64xf32>, vector<64x64xf32>, vector<16x64xf32> -> vector<16x64xf32>
    %43 = tpu.reciprocal %41 {approx = true} : vector<1x64xf32> -> vector<1x64xf32>
    %44 = vector.broadcast %43 : vector<1x64xf32> to vector<16x64xf32>
    %45 = arith.mulf %42, %44 : vector<16x64xf32>
    %c0_23 = arith.constant 0 : index
    %c0_24 = arith.constant 0 : index
    %46 = vector.load %arg4[%c0_23, %c0_24] : memref<16x16xf32, #tpu.memory_space<vmem>>, vector<16x16xf32>
    %cst_25 = arith.constant dense<0.000000e+00> : vector<16x64xf32>
    %47 = tpu.matmul %46, %45, %cst_25 {dimension_numbers = #tpu.dot_dimension_numbers<[1], [0], [0], [1], [0, 0, 1, 1], [], []>} : vector<16x16xf32>, vector<16x64xf32>, vector<16x64xf32> -> vector<16x64xf32>
    %c0_26 = arith.constant 0 : index
    %c0_27 = arith.constant 0 : index
    %48 = vector.load %arg5[%c0_26, %c0_27] : memref<16x1xf32, #tpu.memory_space<vmem>>, vector<16x1xf32>
    %49 = vector.broadcast %48 : vector<16x1xf32> to vector<16x64xf32>
    %50 = arith.addf %47, %49 : vector<16x64xf32>
    %51 = arith.addf %1, %50 : vector<16x64xf32>
    %c0_28 = arith.constant 0 : index
    %c0_29 = arith.constant 0 : index
    %c0_30 = arith.constant 0 : index
    %52 = vector.load %arg9[%c0_28, %c0_29, %c0_30] : memref<1x16x64xf32, #tpu.memory_space<vmem>>, vector<1x16x64xf32>
    %53 = vector.shape_cast %52 : vector<1x16x64xf32> to vector<16x64xf32>
    %54 = vector.shape_cast %51 : vector<16x64xf32> to vector<1x16x64xf32>
    tpu.vector_store %arg9[%c0_28, %c0_29, %c0_30], %54 {strides = array<i32>} : memref<1x16x64xf32, #tpu.memory_space<vmem>>, vector<1x16x64xf32>,
    return
  }
  func.func @transform_0(%arg0: i32) -> (i32, i32, i32) {
    %c0_i32 = arith.constant 0 : i32
    %c0_i32_0 = arith.constant 0 : i32
    %c0_i32_1 = arith.constant 0 : i32
    return %arg0, %c0_i32, %c0_i32_0 : i32, i32, i32
  }
  func.func @transform_1(%arg0: i32) -> (i32, i32) {
    %c0_i32 = arith.constant 0 : i32
    %c0_i32_0 = arith.constant 0 : i32
    %c0_i32_1 = arith.constant 0 : i32
    return %c0_i32, %c0_i32_0 : i32, i32
  }
  func.func @transform_2(%arg0: i32) -> (i32, i32) {
    %c0_i32 = arith.constant 0 : i32
    %c0_i32_0 = arith.constant 0 : i32
    %c0_i32_1 = arith.constant 0 : i32
    return %c0_i32, %c0_i32_0 : i32, i32
  }
  func.func @transform_3(%arg0: i32) -> (i32, i32) {
    %c0_i32 = arith.constant 0 : i32
    %c0_i32_0 = arith.constant 0 : i32
    %c0_i32_1 = arith.constant 0 : i32
    return %c0_i32, %c0_i32_0 : i32, i32
  }
  func.func @transform_4(%arg0: i32) -> (i32, i32) {
    %c0_i32 = arith.constant 0 : i32
    %c0_i32_0 = arith.constant 0 : i32
    %c0_i32_1 = arith.constant 0 : i32
    return %c0_i32, %c0_i32_0 : i32, i32
  }
  func.func @transform_5(%arg0: i32) -> (i32, i32) {
    %c0_i32 = arith.constant 0 : i32
    %c0_i32_0 = arith.constant 0 : i32
    %c0_i32_1 = arith.constant 0 : i32
    return %c0_i32, %c0_i32_0 : i32, i32
  }
  func.func @transform_6(%arg0: i32) -> (i32, i32) {
    %c0_i32 = arith.constant 0 : i32
    %c0_i32_0 = arith.constant 0 : i32
    %c0_i32_1 = arith.constant 0 : i32
    return %c0_i32, %c0_i32_0 : i32, i32
  }
  func.func @transform_7(%arg0: i32) -> (i32, i32) {
    %c0_i32 = arith.constant 0 : i32
    %c0_i32_0 = arith.constant 0 : i32
    %c0_i32_1 = arith.constant 0 : i32
    return %c0_i32, %c0_i32_0 : i32, i32
  }
  func.func @transform_8(%arg0: i32) -> (i32, i32, i32) {
    %c0_i32 = arith.constant 0 : i32
    %c0_i32_0 = arith.constant 0 : i32
    %c0_i32_1 = arith.constant 0 : i32
    return %arg0, %c0_i32, %c0_i32_0 : i32, i32, i32
  }
}

</mosaic_0001>

<llo_original>
// kernel: attention_block_forward.1
$region0: #{attention_block_forward.1}
  #allocation0 [shape = 'u32[]', space=smem, size = 0x4, offset = 0x4, fixed_abs, tag = 'smem constant byte address 0x4 - core index']
  #allocation1 [shape = 'u32[144,128]{1,0:T(1,128)}', space=vmem, size = 0x12000, scoped, tag = 'internal scratch']
  %s0 = inlined_call_operand.vmem [shape: f32[2,16,64], index: 0, kind: input, shape index: {}]
  %s1 = inlined_call_operand.vmem [shape: f32[48,16], index: 1, kind: input, shape index: {}]
  %s2 = inlined_call_operand.vmem [shape: f32[48,1], index: 2, kind: input, shape index: {}]
  %s3 = inlined_call_operand.vmem [shape: f32[16,16], index: 3, kind: input, shape index: {}]
  %s4 = inlined_call_operand.vmem [shape: f32[16,1], index: 4, kind: input, shape index: {}]
  %s5 = inlined_call_operand.vmem [shape: f32[16,1], index: 5, kind: input, shape index: {}]
  %s6 = inlined_call_operand.vmem [shape: f32[16,1], index: 6, kind: input, shape index: {}]
  %s7 = inlined_call_operand.vmem [shape: f32[16,16], index: 7, kind: input, shape index: {}]
  %s8 = inlined_call_operand.vmem [shape: f32[2,16,64], index: 8, kind: output, shape index: {}]
  %s9 = sld [smem:[#allocation0]]
  $region65: #{attention_block_forward.1} parent=0
    _
  %s11 = ssub.s32 1, %s9
  %s12 = scalar_select 0, %s11, %s9
  loop: start=0, step=1, limit=4
  $region2: #{attention_block_forward.1} parent=0 // loop_pre_header
    _
  $region3: #{attention_block_forward.1} parent=0 // loop_header
    %s14 = sphi 0, %s18
    %p15 = scmp.ge.s32.totalorder %s14, 4
    %s24 = sphi 0, %s26
    %s27 = sphi 0, %s24
    %s28 = sphi 0, %s27
    %s44 = sphi 0, %s28
    %s48 = sphi 0, %s48
    %s50 = sphi 0, %s48
    %s51 = sphi 0, %s50
    %s65 = sphi 0, %s51
    %s69 = sphi 0, %s69
    %s71 = sphi 0, %s69
    %s72 = sphi 0, %s71
    %s86 = sphi 0, %s72
    %s90 = sphi 0, %s90
    %s92 = sphi 0, %s90
    %s93 = sphi 0, %s92
    %s107 = sphi 0, %s93
    %s111 = sphi 0, %s111
    %s113 = sphi 0, %s111
    %s114 = sphi 0, %s113
    %s128 = sphi 0, %s114
    %s132 = sphi 0, %s132
    %s134 = sphi 0, %s132
    %s135 = sphi 0, %s134
    %s149 = sphi 0, %s135
    %s153 = sphi 0, %s153
    %s155 = sphi 0, %s153
    %s156 = sphi 0, %s155
    %s170 = sphi 0, %s156
    %s174 = sphi 0, %s174
    %s176 = sphi 0, %s174
    %s177 = sphi 0, %s176
    %s191 = sphi 0, %s177
    %s197 = sphi 0, %s199
    %s200 = sphi 0, %s197
    %s201 = sphi 0, %s200
    %s217 = sphi 0, %s201
  $region4: #{attention_block_forward.1} parent=0 // loop_header_branch
    %17 = sbr.rel (%p15) target = $region8
  $region5: #{attention_block_forward.1} parent=0 // loop_body
    %s19 = ssub.s32 %s14, 1
    %s20 = ssub.s32 %s14, 2
    %s21 = sadd.s32 %s14, 1
    %s22 = ssub.s32 %s14, %s21
    %p23 = scmp.eq.s32.totalorder %s22, 0
    %s25 = sadd.s32 %s24, 1
    %s26 = scalar_select %p23, %s24, %s25
    %p29 = pneg %p23
    %p30 = scmp.eq.s32.totalorder %s14, 1
    %p31 = por %p29, %p30
    %p32 = scmp.ne.s32.totalorder %s24, %s27
    %p33 = scmp.eq.s32.totalorder %s14, 0
    %p34 = por %p32, %p33
    %p35 = scmp.ne.s32.totalorder %s24, %s27
    %p36 = scmp.eq.s32.totalorder %s19, 1
    %p37 = por %p35, %p36
    %p38 = scmp.ne.s32.totalorder %s27, %s28
    %p39 = scmp.eq.s32.totalorder %s19, 0
    %p40 = por %p38, %p39
    %p41 = scmp.ne.s32.totalorder %s27, %s28
    %p42 = scmp.eq.s32.totalorder %s20, 1
    %p43 = por %p41, %p42
    %p45 = scmp.ne.s32.totalorder %s28, %s44
    %p46 = scmp.eq.s32.totalorder %s20, 0
    %p47 = por %p45, %p46
    %s49 = sadd.s32 %s48, 1
    %p52 = scmp.eq.s32.totalorder %s14, 1
    %p53 = scmp.ne.s32.totalorder %s48, %s50
    %p54 = scmp.eq.s32.totalorder %s14, 0
    %p55 = por %p53, %p54
    %p56 = scmp.ne.s32.totalorder %s48, %s50
    %p57 = scmp.eq.s32.totalorder %s19, 1
    %p58 = por %p56, %p57
    %p59 = scmp.ne.s32.totalorder %s50, %s51
    %p60 = scmp.eq.s32.totalorder %s19, 0
    %p61 = por %p59, %p60
    %p62 = scmp.ne.s32.totalorder %s50, %s51
    %p63 = scmp.eq.s32.totalorder %s20, 1
    %p64 = por %p62, %p63
    %p66 = scmp.ne.s32.totalorder %s51, %s65
    %p67 = scmp.eq.s32.totalorder %s20, 0
    %p68 = por %p66, %p67
    %s70 = sadd.s32 %s69, 1
    %p73 = scmp.eq.s32.totalorder %s14, 1
    %p74 = scmp.ne.s32.totalorder %s69, %s71
    %p75 = scmp.eq.s32.totalorder %s14, 0
    %p76 = por %p74, %p75
    %p77 = scmp.ne.s32.totalorder %s69, %s71
    %p78 = scmp.eq.s32.totalorder %s19, 1
    %p79 = por %p77, %p78
    %p80 = scmp.ne.s32.totalorder %s71, %s72
    %p81 = scmp.eq.s32.totalorder %s19, 0
    %p82 = por %p80, %p81
    %p83 = scmp.ne.s32.totalorder %s71, %s72
    %p84 = scmp.eq.s32.totalorder %s20, 1
    %p85 = por %p83, %p84
    %p87 = scmp.ne.s32.totalorder %s72, %s86
    %p88 = scmp.eq.s32.totalorder %s20, 0
    %p89 = por %p87, %p88
    %s91 = sadd.s32 %s90, 1
    %p94 = scmp.eq.s32.totalorder %s14, 1
    %p95 = scmp.ne.s32.totalorder %s90, %s92
    %p96 = scmp.eq.s32.totalorder %s14, 0
    %p97 = por %p95, %p96
    %p98 = scmp.ne.s32.totalorder %s90, %s92
    %p99 = scmp.eq.s32.totalorder %s19, 1
    %p100 = por %p98, %p99
    %p101 = scmp.ne.s32.totalorder %s92, %s93
    %p102 = scmp.eq.s32.totalorder %s19, 0
    %p103 = por %p101, %p102
    %p104 = scmp.ne.s32.totalorder %s92, %s93
    %p105 = scmp.eq.s32.totalorder %s20, 1
    %p106 = por %p104, %p105
    %p108 = scmp.ne.s32.totalorder %s93, %s107
    %p109 = scmp.eq.s32.totalorder %s20, 0
    %p110 = por %p108, %p109
    %s112 = sadd.s32 %s111, 1
    %p115 = scmp.eq.s32.totalorder %s14, 1
    %p116 = scmp.ne.s32.totalorder %s111, %s113
    %p117 = scmp.eq.s32.totalorder %s14, 0
    %p118 = por %p116, %p117
    %p119 = scmp.ne.s32.totalorder %s111, %s113
    %p120 = scmp.eq.s32.totalorder %s19, 1
    %p121 = por %p119, %p120
    %p122 = scmp.ne.s32.totalorder %s113, %s114
    %p123 = scmp.eq.s32.totalorder %s19, 0
    %p124 = por %p122, %p123
    %p125 = scmp.ne.s32.totalorder %s113, %s114
    %p126 = scmp.eq.s32.totalorder %s20, 1
    %p127 = por %p125, %p126
    %p129 = scmp.ne.s32.totalorder %s114, %s128
    %p130 = scmp.eq.s32.totalorder %s20, 0
    %p131 = por %p129, %p130
    %s133 = sadd.s32 %s132, 1
    %p136 = scmp.eq.s32.totalorder %s14, 1
    %p137 = scmp.ne.s32.totalorder %s132, %s134
    %p138 = scmp.eq.s32.totalorder %s14, 0
    %p139 = por %p137, %p138
    %p140 = scmp.ne.s32.totalorder %s132, %s134
    %p141 = scmp.eq.s32.totalorder %s19, 1
    %p142 = por %p140, %p141
    %p143 = scmp.ne.s32.totalorder %s134, %s135
    %p144 = scmp.eq.s32.totalorder %s19, 0
    %p145 = por %p143, %p144
    %p146 = scmp.ne.s32.totalorder %s134, %s135
    %p147 = scmp.eq.s32.totalorder %s20, 1
    %p148 = por %p146, %p147
    %p150 = scmp.ne.s32.totalorder %s135, %s149
    %p151 = scmp.eq.s32.totalorder %s20, 0
    %p152 = por %p150, %p151
    %s154 = sadd.s32 %s153, 1
    %p157 = scmp.eq.s32.totalorder %s14, 1
    %p158 = scmp.ne.s32.totalorder %s153, %s155
    %p159 = scmp.eq.s32.totalorder %s14, 0
    %p160 = por %p158, %p159
    %p161 = scmp.ne.s32.totalorder %s153, %s155
    %p162 = scmp.eq.s32.totalorder %s19, 1
    %p163 = por %p161, %p162
    %p164 = scmp.ne.s32.totalorder %s155, %s156
    %p165 = scmp.eq.s32.totalorder %s19, 0
    %p166 = por %p164, %p165
    %p167 = scmp.ne.s32.totalorder %s155, %s156
    %p168 = scmp.eq.s32.totalorder %s20, 1
    %p169 = por %p167, %p168
    %p171 = scmp.ne.s32.totalorder %s156, %s170
    %p172 = scmp.eq.s32.totalorder %s20, 0
    %p173 = por %p171, %p172
    %s175 = sadd.s32 %s174, 1
    %p178 = scmp.eq.s32.totalorder %s14, 1
    %p179 = scmp.ne.s32.totalorder %s174, %s176
    %p180 = scmp.eq.s32.totalorder %s14, 0
    %p181 = por %p179, %p180
    %p182 = scmp.ne.s32.totalorder %s174, %s176
    %p183 = scmp.eq.s32.totalorder %s19, 1
    %p184 = por %p182, %p183
    %p185 = scmp.ne.s32.totalorder %s176, %s177
    %p186 = scmp.eq.s32.totalorder %s19, 0
    %p187 = por %p185, %p186
    %p188 = scmp.ne.s32.totalorder %s176, %s177
    %p189 = scmp.eq.s32.totalorder %s20, 1
    %p190 = por %p188, %p189
    %p192 = scmp.ne.s32.totalorder %s177, %s191
    %p193 = scmp.eq.s32.totalorder %s20, 0
    %p194 = por %p192, %p193
    %s195 = ssub.s32 %s14, %s21
    %p196 = scmp.eq.s32.totalorder %s195, 0
    %s198 = sadd.s32 %s197, 1
    %s199 = scalar_select %p196, %s197, %s198
    %p202 = pneg %p196
    %p203 = scmp.eq.s32.totalorder %s14, 1
    %p204 = por %p202, %p203
    %p205 = scmp.ne.s32.totalorder %s197, %s200
    %p206 = scmp.eq.s32.totalorder %s14, 0
    %p207 = por %p205, %p206
    %p208 = scmp.ne.s32.totalorder %s197, %s200
    %p209 = scmp.eq.s32.totalorder %s19, 1
    %p210 = por %p208, %p209
    %p211 = scmp.ne.s32.totalorder %s200, %s201
    %p212 = scmp.eq.s32.totalorder %s19, 0
    %p213 = por %p211, %p212
    %p214 = scmp.ne.s32.totalorder %s200, %s201
    %p215 = scmp.eq.s32.totalorder %s20, 1
    %p216 = por %p214, %p215
    %p218 = scmp.ne.s32.totalorder %s201, %s217
    %p219 = scmp.eq.s32.totalorder %s20, 0
    %p220 = por %p218, %p219
    %p221 = scmp.le.s32.totalorder 1, %s14
    %p222 = scmp.lt.s32.totalorder %s14, 3
    %p223 = pnand %p221, %p222
    %p224 = pneg %p223
    // Predicated region
    $region9: #{attention_block_forward.1} parent=5 // pred_check
      _
    $region10: #{attention_block_forward.1} parent=5 // pred_check_branch
      %226 = sbr.rel (%p223) target = $region12
    $region11: #{attention_block_forward.1} parent=5 // pred_region
      %s227 = ssub.s32 %s14, 1
      // Predicated region
      $region13: #{attention_block_forward.1} parent=11 // pred_check
        %p228 = pneg %p61
      $region14: #{attention_block_forward.1} parent=11 // pred_check_branch
        %230 = sbr.rel (%p228) target = $region16
      $region15: #{attention_block_forward.1} parent=11 // pred_region
        _
      $region16: #{attention_block_forward.1} parent=11 // pred_fallthru
        _
      // Predicated region
      $region17: #{attention_block_forward.1} parent=11 // pred_check
        %p231 = pneg %p82
      $region18: #{attention_block_forward.1} parent=11 // pred_check_branch
        %233 = sbr.rel (%p231) target = $region20
      $region19: #{attention_block_forward.1} parent=11 // pred_region
        _
      $region20: #{attention_block_forward.1} parent=11 // pred_fallthru
        _
      // Predicated region
      $region21: #{attention_block_forward.1} parent=11 // pred_check
        %p234 = pneg %p103
      $region22: #{attention_block_forward.1} parent=11 // pred_check_branch
        %236 = sbr.rel (%p234) target = $region24
      $region23: #{attention_block_forward.1} parent=11 // pred_region
        _
      $region24: #{attention_block_forward.1} parent=11 // pred_fallthru
        _
      // Predicated region
      $region25: #{attention_block_forward.1} parent=11 // pred_check
        %p237 = pneg %p124
      $region26: #{attention_block_forward.1} parent=11 // pred_check_branch
        %239 = sbr.rel (%p237) target = $region28
      $region27: #{attention_block_forward.1} parent=11 // pred_region
        _
      $region28: #{attention_block_forward.1} parent=11 // pred_fallthru
        _
      // Predicated region
      $region29: #{attention_block_forward.1} parent=11 // pred_check
        %p240 = pneg %p145
      $region30: #{attention_block_forward.1} parent=11 // pred_check_branch
        %242 = sbr.rel (%p240) target = $region32
      $region31: #{attention_block_forward.1} parent=11 // pred_region
        _
      $region32: #{attention_block_forward.1} parent=11 // pred_fallthru
        _
      // Predicated region
      $region33: #{attention_block_forward.1} parent=11 // pred_check
        %p243 = pneg %p166
      $region34: #{attention_block_forward.1} parent=11 // pred_check_branch
        %245 = sbr.rel (%p243) target = $region36
      $region35: #{attention_block_forward.1} parent=11 // pred_region
        _
      $region36: #{attention_block_forward.1} parent=11 // pred_fallthru
        _
      // Predicated region
      $region37: #{attention_block_forward.1} parent=11 // pred_check
        %p246 = pneg %p187
      $region38: #{attention_block_forward.1} parent=11 // pred_check_branch
        %248 = sbr.rel (%p246) target = $region40
      $region39: #{attention_block_forward.1} parent=11 // pred_region
        _
      $region40: #{attention_block_forward.1} parent=11 // pred_fallthru
        _
    $region12: #{attention_block_forward.1} parent=5 // pred_fallthru
      _
    %p249 = scmp.lt.s32.totalorder %s14, 2
    // Predicated region
    $region41: #{attention_block_forward.1} parent=5 // pred_check
      %p250 = pneg %p249
    $region42: #{attention_block_forward.1} parent=5 // pred_check_branch
      %252 = sbr.rel (%p250) target = $region44
    $region43: #{attention_block_forward.1} parent=5 // pred_region
      // Predicated region
      $region45: #{attention_block_forward.1} parent=43 // pred_check
        %p253 = pneg %p34
      $region46: #{attention_block_forward.1} parent=43 // pred_check_branch
        %255 = sbr.rel (%p253) target = $region48
      $region47: #{attention_block_forward.1} parent=43 // pred_region
        %p256 = scmp.lt.s32.totalorder %s14, 1
        %s257 = scalar_select %p256, %s14, 1
        %s258 = smul.addr %s257, 2
        %s259 = smul.addr %s258, 8
        %s260 = scalar_lea.vmem %s0, %s259
      $region48: #{attention_block_forward.1} parent=43 // pred_fallthru
        _
    $region44: #{attention_block_forward.1} parent=5 // pred_fallthru
      _
    %p261 = scmp.le.s32.totalorder 1, %s14
    %p262 = scmp.lt.s32.totalorder %s14, 3
    %p263 = pnand %p261, %p262
    %p264 = pneg %p263
    // Predicated region
    $region49: #{attention_block_forward.1} parent=5 // pred_check
      _
    $region50: #{attention_block_forward.1} parent=5 // pred_check_branch
      %266 = sbr.rel (%p263) target = $region52
    $region51: #{attention_block_forward.1} parent=5 // pred_region
      %s267 = ssub.s32 %s14, 1
      %p268 = scmp.lt.s32.totalorder %s19, 1
      %s269 = scalar_select %p268, %s19, 1
      %s270 = smul.addr %s269, 2
      %s271 = smul.addr %s270, 8
      %s272 = scalar_lea.vmem %s0, %s271
      %p273 = pneg %p40
      %p274 = pneg %p37
      %p275 = pneg %p61
      %p276 = pneg %p58
      %p277 = pneg %p82
      %p278 = pneg %p79
      %p279 = pneg %p103
      %p280 = pneg %p100
      %p281 = pneg %p124
      %p282 = pneg %p121
      %p283 = pneg %p145
      %p284 = pneg %p142
      %p285 = pneg %p166
      %p286 = pneg %p163
      %p287 = pneg %p187
      %p288 = pneg %p184
      %p289 = pneg %p213
      %p290 = pneg %p210
      %p291 = scmp.lt.s32.totalorder %s19, 1
      %s292 = scalar_select %p291, %s19, 1
      %s293 = smul.addr %s292, 2
      %s294 = smul.addr %s293, 8
      %s295 = scalar_lea.vmem %s8, %s294
      %p296 = scmp.lt.s32.totalorder %s19, 1
      %s297 = scalar_select %p296, %s19, 1
      %s298 = smul.addr %s297, 2
      %s299 = smul.addr %s298, 8
      %s300 = scalar_lea.vmem %s0, %s299
      %p301 = scmp.lt.s32.totalorder %s19, 1
      %s302 = scalar_select %p301, %s19, 1
      %s303 = smul.addr %s302, 2
      %s304 = smul.addr %s303, 8
      %s305 = scalar_lea.vmem %s8, %s304
      %v306 = vld [vmem:[%s300] sm:$0xff]
      %v307 = vld [vmem:[%s300 + $0x8] sm:$0xff]
      %vm308 = vcmask 523264
      %v309 = vsel %vm308, %v306, 0.0
      %310 = vadd.xlane.f32.xlu0 %v309
      %v311 = vpop.xlane.xlu0 %310
      %v312 = vsel %vm308, %v307, 0.0
      %313 = vadd.xlane.f32.xlu0 %v312
      %v314 = vpop.xlane.xlu0 %313
      %v315 = vmul.f32 %v306, %v306
      %v316 = vmul.f32 %v307, %v307
      %v317 = vsel %vm308, %v315, 0.0
      %318 = vadd.xlane.f32.xlu0 %v317
      %v319 = vpop.xlane.xlu0 %318
      %v320 = vsel %vm308, %v316, 0.0
      %321 = vadd.xlane.f32.xlu0 %v320
      %v322 = vpop.xlane.xlu0 %321
      %v323 = vld [vmem:[%s7] sm:$0xff]
      %v324 = vld [vmem:[%s7 + $0x8] sm:$0xff]
      %vm325 = vcmask 130048
      %v327 = vsel %vm325, %v323, 0
      %v330 = vsel %vm325, %v324, 0
      %332 = vmatprep.subr.mxu0 0.0
      %333 = vmatpush1.msra.mxu0 %v311
      %334 = vmatprep.subr.mxu0 0.0
      %335 = vmatpush1.msra.mxu0 %v314
      %336 = vmatprep.subr.mxu0 0.0
      %337 = vmatpush1.msra.mxu0 0.0
      %338 = vmatprep.subr.mxu0 0.0
      %339 = vmatpush1.msra.mxu0 0.0
      %340 = vmatprep.subr.mxu0 0.0
      %341 = vmatpush1.msra.mxu0 0.0
      %342 = vmatprep.subr.mxu0 0.0
      %343 = vmatpush1.msra.mxu0 0.0
      %344 = vmatprep.subr.mxu0 0.0
      %345 = vmatpush1.msra.mxu0 0.0
      %346 = vmatprep.subr.mxu0 0.0
      %347 = vmatpush1.msra.mxu0 0.0
      %348 = vmatprep.subr.mxu0 0.0
      %349 = vmatpush1.msra.mxu0 0.0
      %350 = vmatprep.subr.mxu0 0.0
      %351 = vmatpush1.msra.mxu0 0.0
      %352 = vmatprep.subr.mxu0 0.0
      %353 = vmatpush1.msra.mxu0 0.0
      %354 = vmatprep.subr.mxu0 0.0
      %355 = vmatpush1.msra.mxu0 0.0
      %356 = vmatprep.subr.mxu0 0.0
      %357 = vmatpush1.msra.mxu0 0.0
      %358 = vmatprep.subr.mxu0 0.0
      %359 = vmatpush1.msra.mxu0 0.0
      %360 = vmatprep.subr.mxu0 0.0
      %361 = vmatpush1.msra.mxu0 0.0
      %362 = vmatprep.subr.mxu0 0.0
      %363 = vmatpush1.msra.mxu0 0.0
      %364 = vmatprep.subr.mxu0 0.0
      %365 = vmatpush1.msra.mxu0 0.0
      %366 = vmatprep.subr.mxu0 0.0
      %367 = vmatpush1.msra.mxu0 0.0
      %368 = vmatprep.subr.mxu0 0.0
      %369 = vmatpush1.msra.mxu0 0.0
      %370 = vmatprep.subr.mxu0 0.0
      %371 = vmatpush1.msra.mxu0 0.0
      %372 = vmatprep.subr.mxu0 0.0
      %373 = vmatpush1.msra.mxu0 0.0
      %374 = vmatprep.subr.mxu0 0.0
      %375 = vmatpush1.msra.mxu0 0.0
      %376 = vmatprep.subr.mxu0 0.0
      %377 = vmatpush1.msra.mxu0 0.0
      %378 = vmatprep.subr.mxu0 0.0
      %379 = vmatpush1.msra.mxu0 0.0
      %380 = vmatprep.subr.mxu0 0.0
      %381 = vmatpush1.msra.mxu0 0.0
      %382 = vmatprep.subr.mxu0 0.0
      %383 = vmatpush1.msra.mxu0 0.0
      %384 = vmatprep.subr.mxu0 0.0
      %385 = vmatpush1.msra.mxu0 0.0
      %386 = vmatprep.subr.mxu0 0.0
      %387 = vmatpush1.msra.mxu0 0.0
      %388 = vmatprep.subr.mxu0 0.0
      %389 = vmatpush1.msra.mxu0 0.0
      %390 = vmatprep.subr.mxu0 0.0
      %391 = vmatpush1.msra.mxu0 0.0
      %392 = vmatprep.subr.mxu0 0.0
      %393 = vmatpush1.msra.mxu0 0.0
      %394 = vmatprep.subr.mxu0 0.0
      %395 = vmatpush1.msra.mxu0 0.0
      %396 = vmatprep.mubr.f32.mxu0 0.0
      %397 = vmatmul.mubr.f32.gmra.mrb[0].mxu0 %v327
      %v398 = vpop.f32.mrb[0].mxu0
      %v399 = vadd.f32 0.0, %v398
      %v400 = vpop.f32.mrb[0].mxu0
      %401 = vmatprep.mubr.f32.mxu0 0.0
      %402 = vmatmul.mubr.f32.gmra.mrb[0].mxu0 %v330
      %v403 = vpop.f32.mrb[0].mxu0
      %v404 = vadd.f32 0.0, %v403
      %v405 = vpop.f32.mrb[0].mxu0
      %406 = vdwg.mxu0
      %407 = vmatprep.subr.mxu0 0.0
      %408 = vmatpush1.msra.mxu0 %v319
      %409 = vmatprep.subr.mxu0 0.0
      %410 = vmatpush1.msra.mxu0 %v322
      %411 = vmatprep.subr.mxu0 0.0
      %412 = vmatpush1.msra.mxu0 0.0
      %413 = vmatprep.subr.mxu0 0.0
      %414 = vmatpush1.msra.mxu0 0.0
      %415 = vmatprep.subr.mxu0 0.0
      %416 = vmatpush1.msra.mxu0 0.0
      %417 = vmatprep.subr.mxu0 0.0
      %418 = vmatpush1.msra.mxu0 0.0
      %419 = vmatprep.subr.mxu0 0.0
      %420 = vmatpush1.msra.mxu0 0.0
      %421 = vmatprep.subr.mxu0 0.0
      %422 = vmatpush1.msra.mxu0 0.0
      %423 = vmatprep.subr.mxu0 0.0
      %424 = vmatpush1.msra.mxu0 0.0
      %425 = vmatprep.subr.mxu0 0.0
      %426 = vmatpush1.msra.mxu0 0.0
      %427 = vmatprep.subr.mxu0 0.0
      %428 = vmatpush1.msra.mxu0 0.0
      %429 = vmatprep.subr.mxu0 0.0
      %430 = vmatpush1.msra.mxu0 0.0
      %431 = vmatprep.subr.mxu0 0.0
      %432 = vmatpush1.msra.mxu0 0.0
      %433 = vmatprep.subr.mxu0 0.0
      %434 = vmatpush1.msra.mxu0 0.0
      %435 = vmatprep.subr.mxu0 0.0
      %436 = vmatpush1.msra.mxu0 0.0
      %437 = vmatprep.subr.mxu0 0.0
      %438 = vmatpush1.msra.mxu0 0.0
      %439 = vmatprep.subr.mxu0 0.0
      %440 = vmatpush1.msra.mxu0 0.0
      %441 = vmatprep.subr.mxu0 0.0
      %442 = vmatpush1.msra.mxu0 0.0
      %443 = vmatprep.subr.mxu0 0.0
      %444 = vmatpush1.msra.mxu0 0.0
      %445 = vmatprep.subr.mxu0 0.0
      %446 = vmatpush1.msra.mxu0 0.0
      %447 = vmatprep.subr.mxu0 0.0
      %448 = vmatpush1.msra.mxu0 0.0
      %449 = vmatprep.subr.mxu0 0.0
      %450 = vmatpush1.msra.mxu0 0.0
      %451 = vmatprep.subr.mxu0 0.0
      %452 = vmatpush1.msra.mxu0 0.0
      %453 = vmatprep.subr.mxu0 0.0
      %454 = vmatpush1.msra.mxu0 0.0
      %455 = vmatprep.subr.mxu0 0.0
      %456 = vmatpush1.msra.mxu0 0.0
      %457 = vmatprep.subr.mxu0 0.0
      %458 = vmatpush1.msra.mxu0 0.0
      %459 = vmatprep.subr.mxu0 0.0
      %460 = vmatpush1.msra.mxu0 0.0
      %461 = vmatprep.subr.mxu0 0.0
      %462 = vmatpush1.msra.mxu0 0.0
      %463 = vmatprep.subr.mxu0 0.0
      %464 = vmatpush1.msra.mxu0 0.0
      %465 = vmatprep.subr.mxu0 0.0
      %466 = vmatpush1.msra.mxu0 0.0
      %467 = vmatprep.subr.mxu0 0.0
      %468 = vmatpush1.msra.mxu0 0.0
      %469 = vmatprep.subr.mxu0 0.0
      %470 = vmatpush1.msra.mxu0 0.0
      %471 = vmatprep.mubr.f32.mxu0 0.0
      %472 = vmatmul.mubr.f32.gmra.mrb[0].mxu0 %v327
      %v473 = vpop.f32.mrb[0].mxu0
      %v474 = vadd.f32 0.0, %v473
      %v475 = vpop.f32.mrb[0].mxu0
      %476 = vmatprep.mubr.f32.mxu0 0.0
      %477 = vmatmul.mubr.f32.gmra.mrb[0].mxu0 %v330
      %v478 = vpop.f32.mrb[0].mxu0
      %v479 = vadd.f32 0.0, %v478
      %v480 = vpop.f32.mrb[0].mxu0
      %481 = vdwg.mxu0
      %v482 = vmul.f32 %v399, %v399
      %v483 = vmul.f32 %v404, %v404
      %v484 = vsub.f32 %v474, %v482
      %v485 = vsub.f32 %v479, %v483
      %487 = vset.pattern.permute.xlu0 0
      %488 = vperm.xlu0 %487, %v399
      %v489 = vpop.permute.xlu0 %488
      %492 = vset.pattern.permute.xlu0 0
      %493 = vperm.xlu0 %492, %v404
      %v494 = vpop.permute.xlu0 %493
      %v496 = vsub.f32 %v306, %v489
      %v497 = vsub.f32 %v307, %v494
      %v498 = vadd.f32 %v484, 1e-06
      %v499 = vadd.f32 %v485, 1e-06
      %v500 = vrsqrt.pop %v498
      %v501 = vrsqrt.pop %v499
      %503 = vset.pattern.permute.xlu0 0
      %504 = vperm.xlu0 %503, %v500
      %v505 = vpop.permute.xlu0 %504
      %508 = vset.pattern.permute.xlu0 0
      %509 = vperm.xlu0 %508, %v501
      %v510 = vpop.permute.xlu0 %509
      %v512 = vmul.f32 %v496, %v505
      %v513 = vmul.f32 %v497, %v510
      %v514 = vld [vmem:[%s5] sm:$0xff]
      %v515 = vld [vmem:[%s5 + $0x8] sm:$0xff]
      %517 = vset.pattern.permute.xlu0 0
      %518 = vperm.xlu0 %517, %v514
      %v519 = vpop.permute.xlu0 %518
      %522 = vset.pattern.permute.xlu0 0
      %523 = vperm.xlu0 %522, %v515
      %v524 = vpop.permute.xlu0 %523
      %v526 = vmul.f32 %v512, %v519
      %v527 = vmul.f32 %v513, %v524
      %v528 = vld [vmem:[%s6] sm:$0xff]
      %v529 = vld [vmem:[%s6 + $0x8] sm:$0xff]
      %531 = vset.pattern.permute.xlu0 0
      %532 = vperm.xlu0 %531, %v528
      %v533 = vpop.permute.xlu0 %532
      %536 = vset.pattern.permute.xlu0 0
      %537 = vperm.xlu0 %536, %v529
      %v538 = vpop.permute.xlu0 %537
      %v540 = vadd.f32 %v526, %v533
      %v541 = vadd.f32 %v527, %v538
      %v542 = vld [vmem:[%s1] sm:$0xff]
      %v543 = vld [vmem:[%s1 + $0x8] sm:$0xff]
      %v544 = vld [vmem:[%s1 + $0x10] sm:$0xff]
      %v545 = vld [vmem:[%s1 + $0x18] sm:$0xff]
      %v546 = vld [vmem:[%s1 + $0x20] sm:$0xff]
      %v547 = vld [vmem:[%s1 + $0x28] sm:$0xff]
      %v548 = vld [vmem:[%s2] sm:$0xff]
      %v549 = vld [vmem:[%s2 + $0x8] sm:$0xff]
      %v550 = vld [vmem:[%s2 + $0x10] sm:$0xff]
      %v551 = vld [vmem:[%s2 + $0x18] sm:$0xff]
      %v552 = vld [vmem:[%s2 + $0x20] sm:$0xff]
      %v553 = vld [vmem:[%s2 + $0x28] sm:$0xff]
      %555 = vset.pattern.permute.xlu0 0
      %556 = vperm.xlu0 %555, %v548
      %v557 = vpop.permute.xlu0 %556
      %560 = vset.pattern.permute.xlu0 0
      %561 = vperm.xlu0 %560, %v549
      %v562 = vpop.permute.xlu0 %561
      %565 = vset.pattern.permute.xlu0 0
      %566 = vperm.xlu0 %565, %v550
      %v567 = vpop.permute.xlu0 %566
      %570 = vset.pattern.permute.xlu0 0
      %571 = vperm.xlu0 %570, %v551
      %v572 = vpop.permute.xlu0 %571
      %575 = vset.pattern.permute.xlu0 0
      %576 = vperm.xlu0 %575, %v552
      %v577 = vpop.permute.xlu0 %576
      %580 = vset.pattern.permute.xlu0 0
      %581 = vperm.xlu0 %580, %v553
      %v582 = vpop.permute.xlu0 %581
      %v585 = vsel %vm325, %v542, 0
      %v588 = vsel %vm325, %v543, 0
      %v591 = vsel %vm325, %v544, 0
      %v594 = vsel %vm325, %v545, 0
      %v597 = vsel %vm325, %v546, 0
      %v600 = vsel %vm325, %v547, 0
      %602 = vmatprep.subr.mxu0 0.0
      %603 = vmatpush1.msra.mxu0 %v540
      %604 = vmatprep.subr.mxu0 0.0
      %605 = vmatpush1.msra.mxu0 %v541
      %606 = vmatprep.subr.mxu0 0.0
      %607 = vmatpush1.msra.mxu0 0.0
      %608 = vmatprep.subr.mxu0 0.0
      %609 = vmatpush1.msra.mxu0 0.0
      %610 = vmatprep.subr.mxu0 0.0
      %611 = vmatpush1.msra.mxu0 0.0
      %612 = vmatprep.subr.mxu0 0.0
      %613 = vmatpush1.msra.mxu0 0.0
      %614 = vmatprep.subr.mxu0 0.0
      %615 = vmatpush1.msra.mxu0 0.0
      %616 = vmatprep.subr.mxu0 0.0
      %617 = vmatpush1.msra.mxu0 0.0
      %618 = vmatprep.subr.mxu0 0.0
      %619 = vmatpush1.msra.mxu0 0.0
      %620 = vmatprep.subr.mxu0 0.0
      %621 = vmatpush1.msra.mxu0 0.0
      %622 = vmatprep.subr.mxu0 0.0
      %623 = vmatpush1.msra.mxu0 0.0
      %624 = vmatprep.subr.mxu0 0.0
      %625 = vmatpush1.msra.mxu0 0.0
      %626 = vmatprep.subr.mxu0 0.0
      %627 = vmatpush1.msra.mxu0 0.0
      %628 = vmatprep.subr.mxu0 0.0
      %629 = vmatpush1.msra.mxu0 0.0
      %630 = vmatprep.subr.mxu0 0.0
      %631 = vmatpush1.msra.mxu0 0.0
      %632 = vmatprep.subr.mxu0 0.0
      %633 = vmatpush1.msra.mxu0 0.0
      %634 = vmatprep.subr.mxu0 0.0
      %635 = vmatpush1.msra.mxu0 0.0
      %636 = vmatprep.subr.mxu0 0.0
      %637 = vmatpush1.msra.mxu0 0.0
      %638 = vmatprep.subr.mxu0 0.0
      %639 = vmatpush1.msra.mxu0 0.0
      %640 = vmatprep.subr.mxu0 0.0
      %641 = vmatpush1.msra.mxu0 0.0
      %642 = vmatprep.subr.mxu0 0.0
      %643 = vmatpush1.msra.mxu0 0.0
      %644 = vmatprep.subr.mxu0 0.0
      %645 = vmatpush1.msra.mxu0 0.0
      %646 = vmatprep.subr.mxu0 0.0
      %647 = vmatpush1.msra.mxu0 0.0
      %648 = vmatprep.subr.mxu0 0.0
      %649 = vmatpush1.msra.mxu0 0.0
      %650 = vmatprep.subr.mxu0 0.0
      %651 = vmatpush1.msra.mxu0 0.0
      %652 = vmatprep.subr.mxu0 0.0
      %653 = vmatpush1.msra.mxu0 0.0
      %654 = vmatprep.subr.mxu0 0.0
      %655 = vmatpush1.msra.mxu0 0.0
      %656 = vmatprep.subr.mxu0 0.0
      %657 = vmatpush1.msra.mxu0 0.0
      %658 = vmatprep.subr.mxu0 0.0
      %659 = vmatpush1.msra.mxu0 0.0
      %660 = vmatprep.subr.mxu0 0.0
      %661 = vmatpush1.msra.mxu0 0.0
      %662 = vmatprep.subr.mxu0 0.0
      %663 = vmatpush1.msra.mxu0 0.0
      %664 = vmatprep.subr.mxu0 0.0
      %665 = vmatpush1.msra.mxu0 0.0
      %666 = vmatprep.mubr.f32.mxu0 0.0
      %667 = vmatmul.mubr.f32.gmra.mrb[0].mxu0 %v585
      %v668 = vpop.f32.mrb[0].mxu0
      %v669 = vadd.f32 %v557, %v668
      %v670 = vpop.f32.mrb[0].mxu0
      %671 = vmatprep.mubr.f32.mxu0 0.0
      %672 = vmatmul.mubr.f32.gmra.mrb[0].mxu0 %v588
      %v673 = vpop.f32.mrb[0].mxu0
      %v674 = vadd.f32 %v562, %v673
      %v675 = vpop.f32.mrb[0].mxu0
      %676 = vmatprep.mubr.f32.mxu0 0.0
      %677 = vmatmul.mubr.f32.gmra.mrb[0].mxu0 %v591
      %v678 = vpop.f32.mrb[0].mxu0
      %v679 = vadd.f32 %v567, %v678
      %v680 = vpop.f32.mrb[0].mxu0
      %681 = vmatprep.mubr.f32.mxu0 0.0
      %682 = vmatmul.mubr.f32.gmra.mrb[0].mxu0 %v594
      %v683 = vpop.f32.mrb[0].mxu0
      %v684 = vadd.f32 %v572, %v683
      %v685 = vpop.f32.mrb[0].mxu0
      %686 = vmatprep.mubr.f32.mxu0 0.0
      %687 = vmatmul.mubr.f32.gmra.mrb[0].mxu0 %v597
      %v688 = vpop.f32.mrb[0].mxu0
      %v689 = vadd.f32 %v577, %v688
      %v690 = vpop.f32.mrb[0].mxu0
      %691 = vmatprep.mubr.f32.mxu0 0.0
      %692 = vmatmul.mubr.f32.gmra.mrb[0].mxu0 %v600
      %v693 = vpop.f32.mrb[0].mxu0
      %v694 = vadd.f32 %v582, %v693
      %v695 = vpop.f32.mrb[0].mxu0
      %696 = vdwg.mxu0
      %697 = vxpose.xlu0.b32.start [1/16] %v679, 128
      %698 = vxpose.xlu0.b32.cont [2/16] %v684, 128
      %699 = vxpose.xlu0.b32.cont [3/16] 0.0, 128
      %700 = vxpose.xlu0.b32.cont [4/16] 0.0, 128
      %701 = vxpose.xlu0.b32.cont [5/16] 0.0, 128
      %702 = vxpose.xlu0.b32.cont [6/16] 0.0, 128
      %703 = vxpose.xlu0.b32.cont [7/16] 0.0, 128
      %704 = vxpose.xlu0.b32.cont [8/16] 0.0, 128
      %705 = vxpose.xlu0.b32.cont [9/16] 0.0, 128
      %706 = vxpose.xlu0.b32.cont [10/16] 0.0, 128
      %707 = vxpose.xlu0.b32.cont [11/16] 0.0, 128
      %708 = vxpose.xlu0.b32.cont [12/16] 0.0, 128
      %709 = vxpose.xlu0.b32.cont [13/16] 0.0, 128
      %710 = vxpose.xlu0.b32.cont [14/16] 0.0, 128
      %711 = vxpose.xlu0.b32.cont [15/16] 0.0, 128
      %712 = vxpose.xlu0.b32.end [16/16] 0.0, 128
      %v713 = vpop.trf.xlu0
      %v714 = vpop.trf.xlu0
      %v715 = vpop.trf.xlu0
      %v716 = vpop.trf.xlu0
      %v717 = vpop.trf.xlu0
      %v718 = vpop.trf.xlu0
      %v719 = vpop.trf.xlu0
      %v720 = vpop.trf.xlu0
      %v721 = vpop.trf.xlu0
      %v722 = vpop.trf.xlu0
      %v723 = vpop.trf.xlu0
      %v724 = vpop.trf.xlu0
      %v725 = vpop.trf.xlu0
      %v726 = vpop.trf.xlu0
      %v727 = vpop.trf.xlu0
      %v728 = vpop.trf.xlu0
      %v730 = vsel %vm325, %v713, 0
      %v733 = vsel %vm325, %v714, 0
      %v736 = vsel %vm325, %v715, 0
      %v739 = vsel %vm325, %v716, 0
      %v742 = vsel %vm325, %v717, 0
      %v745 = vsel %vm325, %v718, 0
      %v748 = vsel %vm325, %v719, 0
      %v751 = vsel %vm325, %v720, 0
      %753 = vmatprep.subr.mxu0 0.0
      %754 = vmatpush1.msra.mxu0 %v669
      %755 = vmatprep.subr.mxu0 0.0
      %756 = vmatpush1.msra.mxu0 %v674
      %757 = vmatprep.subr.mxu0 0.0
      %758 = vmatpush1.msra.mxu0 0.0
      %759 = vmatprep.subr.mxu0 0.0
      %760 = vmatpush1.msra.mxu0 0.0
      %761 = vmatprep.subr.mxu0 0.0
      %762 = vmatpush1.msra.mxu0 0.0
      %763 = vmatprep.subr.mxu0 0.0
      %764 = vmatpush1.msra.mxu0 0.0
      %765 = vmatprep.subr.mxu0 0.0
      %766 = vmatpush1.msra.mxu0 0.0
      %767 = vmatprep.subr.mxu0 0.0
      %768 = vmatpush1.msra.mxu0 0.0
      %769 = vmatprep.subr.mxu0 0.0
      %770 = vmatpush1.msra.mxu0 0.0
      %771 = vmatprep.subr.mxu0 0.0
      %772 = vmatpush1.msra.mxu0 0.0
      %773 = vmatprep.subr.mxu0 0.0
      %774 = vmatpush1.msra.mxu0 0.0
      %775 = vmatprep.subr.mxu0 0.0
      %776 = vmatpush1.msra.mxu0 0.0
      %777 = vmatprep.subr.mxu0 0.0
      %778 = vmatpush1.msra.mxu0 0.0
      %779 = vmatprep.subr.mxu0 0.0
      %780 = vmatpush1.msra.mxu0 0.0
      %781 = vmatprep.subr.mxu0 0.0
      %782 = vmatpush1.msra.mxu0 0.0
      %783 = vmatprep.subr.mxu0 0.0
      %784 = vmatpush1.msra.mxu0 0.0
      %785 = vmatprep.subr.mxu0 0.0
      %786 = vmatpush1.msra.mxu0 0.0
      %787 = vmatprep.subr.mxu0 0.0
      %788 = vmatpush1.msra.mxu0 0.0
      %789 = vmatprep.subr.mxu0 0.0
      %790 = vmatpush1.msra.mxu0 0.0
      %791 = vmatprep.subr.mxu0 0.0
      %792 = vmatpush1.msra.mxu0 0.0
      %793 = vmatprep.subr.mxu0 0.0
      %794 = vmatpush1.msra.mxu0 0.0
      %795 = vmatprep.subr.mxu0 0.0
      %796 = vmatpush1.msra.mxu0 0.0
      %797 = vmatprep.subr.mxu0 0.0
      %798 = vmatpush1.msra.mxu0 0.0
      %799 = vmatprep.subr.mxu0 0.0
      %800 = vmatpush1.msra.mxu0 0.0
      %801 = vmatprep.subr.mxu0 0.0
      %802 = vmatpush1.msra.mxu0 0.0
      %803 = vmatprep.subr.mxu0 0.0
      %804 = vmatpush1.msra.mxu0 0.0
      %805 = vmatprep.subr.mxu0 0.0
      %806 = vmatpush1.msra.mxu0 0.0
      %807 = vmatprep.subr.mxu0 0.0
      %808 = vmatpush1.msra.mxu0 0.0
      %809 = vmatprep.subr.mxu0 0.0
      %810 = vmatpush1.msra.mxu0 0.0
      %811 = vmatprep.subr.mxu0 0.0
      %812 = vmatpush1.msra.mxu0 0.0
      %813 = vmatprep.subr.mxu0 0.0
      %814 = vmatpush1.msra.mxu0 0.0
      %815 = vmatprep.subr.mxu0 0.0
      %816 = vmatpush1.msra.mxu0 0.0
      %817 = vmatprep.mubr.f32.mxu0 0.0
      %818 = vmatmul.mubr.f32.gmra.mrb[0].mxu0 %v730
      %v819 = vpop.f32.mrb[0].mxu0
      %v820 = vadd.f32 0.0, %v819
      %v821 = vpop.f32.mrb[0].mxu0
      %822 = vmatprep.mubr.f32.mxu0 0.0
      %823 = vmatmul.mubr.f32.gmra.mrb[0].mxu0 %v733
      %v824 = vpop.f32.mrb[0].mxu0
      %v825 = vadd.f32 0.0, %v824
      %v826 = vpop.f32.mrb[0].mxu0
      %827 = vmatprep.mubr.f32.mxu0 0.0
      %828 = vmatmul.mubr.f32.gmra.mrb[0].mxu0 %v736
      %v829 = vpop.f32.mrb[0].mxu0
      %v830 = vadd.f32 0.0, %v829
      %v831 = vpop.f32.mrb[0].mxu0
      %832 = vmatprep.mubr.f32.mxu0 0.0
      %833 = vmatmul.mubr.f32.gmra.mrb[0].mxu0 %v739
      %v834 = vpop.f32.mrb[0].mxu0
      %v835 = vadd.f32 0.0, %v834
      %v836 = vpop.f32.mrb[0].mxu0
      %837 = vmatprep.mubr.f32.mxu0 0.0
      %838 = vmatmul.mubr.f32.gmra.mrb[0].mxu0 %v742
      %v839 = vpop.f32.mrb[0].mxu0
      %v840 = vadd.f32 0.0, %v839
      %v841 = vpop.f32.mrb[0].mxu0
      %842 = vmatprep.mubr.f32.mxu0 0.0
      %843 = vmatmul.mubr.f32.gmra.mrb[0].mxu0 %v745
      %v844 = vpop.f32.mrb[0].mxu0
      %v845 = vadd.f32 0.0, %v844
      %v846 = vpop.f32.mrb[0].mxu0
      %847 = vmatprep.mubr.f32.mxu0 0.0
      %848 = vmatmul.mubr.f32.gmra.mrb[0].mxu0 %v748
      %v849 = vpop.f32.mrb[0].mxu0
      %v850 = vadd.f32 0.0, %v849
      %v851 = vpop.f32.mrb[0].mxu0
      %852 = vmatprep.mubr.f32.mxu0 0.0
      %853 = vmatmul.mubr.f32.gmra.mrb[0].mxu0 %v751
      %v854 = vpop.f32.mrb[0].mxu0
      %v855 = vadd.f32 0.0, %v854
      %v856 = vpop.f32.mrb[0].mxu0
      %857 = vdwg.mxu0
      %v858 = vsel %vm308, %v820, -inf
      %v859 = vsel %vm308, %v825, -inf
      %v860 = vsel %vm308, %v830, -inf
      %v861 = vsel %vm308, %v835, -inf
      %v862 = vsel %vm308, %v840, -inf
      %v863 = vmax.f32 %v858, %v862
      %v864 = vsel %vm308, %v845, -inf
      %v865 = vmax.f32 %v859, %v864
      %v866 = vsel %vm308, %v850, -inf
      %v867 = vmax.f32 %v860, %v866
      %v868 = vsel %vm308, %v855, -inf
      %v869 = vmax.f32 %v861, %v868
      %v870 = vmax.f32 %v863, %v865
      %v871 = vmax.f32 %v867, %v869
      %v872 = vmax.f32 %v870, %v871
      %v873 = vrot.slane %v872, 4
      %v874 = vmax.f32 %v872, %v873
      %v875 = vrot.slane %v874, 2
      %v876 = vmax.f32 %v874, %v875
      %v877 = vrot.slane %v876, 1
      %v878 = vmax.f32 %v876, %v877
      %v879 = vsub.f32 %v820, %v878
      %v880 = vsub.f32 %v825, %v878
      %v881 = vsub.f32 %v830, %v878
      %v882 = vsub.f32 %v835, %v878
      %v883 = vsub.f32 %v840, %v878
      %v884 = vsub.f32 %v845, %v878
      %v885 = vsub.f32 %v850, %v878
      %v886 = vsub.f32 %v855, %v878
      %v887 = vmul.f32 %v879, 1.442695
      %v888 = vpow.pop %v887
      %v889 = vmul.f32 %v880, 1.442695
      %v890 = vpow.pop %v889
      %v891 = vmul.f32 %v881, 1.442695
      %v892 = vpow.pop %v891
      %v893 = vmul.f32 %v882, 1.442695
      %v894 = vpow.pop %v893
      %v895 = vmul.f32 %v883, 1.442695
      %v896 = vpow.pop %v895
      %v897 = vmul.f32 %v884, 1.442695
      %v898 = vpow.pop %v897
      %v899 = vmul.f32 %v885, 1.442695
      %v900 = vpow.pop %v899
      %v901 = vmul.f32 %v886, 1.442695
      %v902 = vpow.pop %v901
      %v903 = vsel %vm308, %v888, 0.0
      %v904 = vsel %vm308, %v890, 0.0
      %v905 = vadd.f32 %v903, %v904
      %v906 = vsel %vm308, %v892, 0.0
      %v907 = vadd.f32 %v905, %v906
      %v908 = vsel %vm308, %v894, 0.0
      %v909 = vadd.f32 %v907, %v908
      %v910 = vsel %vm308, %v896, 0.0
      %v911 = vadd.f32 %v909, %v910
      %v912 = vsel %vm308, %v898, 0.0
      %v913 = vadd.f32 %v911, %v912
      %v914 = vsel %vm308, %v900, 0.0
      %v915 = vadd.f32 %v913, %v914
      %v916 = vsel %vm308, %v902, 0.0
      %v917 = vadd.f32 %v915, %v916
      %v918 = vrot.slane %v917, 4
      %v919 = vadd.f32 %v917, %v918
      %v920 = vrot.slane %v919, 2
      %v921 = vadd.f32 %v919, %v920
      %v922 = vrot.slane %v921, 1
      %v923 = vadd.f32 %v921, %v922
      %v925 = vsel %vm308, %v689, 0
      %v928 = vsel %vm308, %v694, 0
      %930 = vmatprep.subr.mxu0 0.0
      %931 = vmatpush1.msra.mxu0 %v888
      %932 = vmatprep.subr.mxu0 0.0
      %933 = vmatpush1.msra.mxu0 %v890
      %934 = vmatprep.subr.mxu0 0.0
      %935 = vmatpush1.msra.mxu0 %v892
      %936 = vmatprep.subr.mxu0 0.0
      %937 = vmatpush1.msra.mxu0 %v894
      %938 = vmatprep.subr.mxu0 0.0
      %939 = vmatpush1.msra.mxu0 %v896
      %940 = vmatprep.subr.mxu0 0.0
      %941 = vmatpush1.msra.mxu0 %v898
      %942 = vmatprep.subr.mxu0 0.0
      %943 = vmatpush1.msra.mxu0 %v900
      %944 = vmatprep.subr.mxu0 0.0
      %945 = vmatpush1.msra.mxu0 %v902
      %946 = vmatprep.subr.mxu0 0.0
      %947 = vmatpush1.msra.mxu0 0.0
      %948 = vmatprep.subr.mxu0 0.0
      %949 = vmatpush1.msra.mxu0 0.0
      %950 = vmatprep.subr.mxu0 0.0
      %951 = vmatpush1.msra.mxu0 0.0
      %952 = vmatprep.subr.mxu0 0.0
      %953 = vmatpush1.msra.mxu0 0.0
      %954 = vmatprep.subr.mxu0 0.0
      %955 = vmatpush1.msra.mxu0 0.0
      %956 = vmatprep.subr.mxu0 0.0
      %957 = vmatpush1.msra.mxu0 0.0
      %958 = vmatprep.subr.mxu0 0.0
      %959 = vmatpush1.msra.mxu0 0.0
      %960 = vmatprep.subr.mxu0 0.0
      %961 = vmatpush1.msra.mxu0 0.0
      %962 = vmatprep.subr.mxu0 0.0
      %963 = vmatpush1.msra.mxu0 0.0
      %964 = vmatprep.subr.mxu0 0.0
      %965 = vmatpush1.msra.mxu0 0.0
      %966 = vmatprep.subr.mxu0 0.0
      %967 = vmatpush1.msra.mxu0 0.0
      %968 = vmatprep.subr.mxu0 0.0
      %969 = vmatpush1.msra.mxu0 0.0
      %970 = vmatprep.subr.mxu0 0.0
      %971 = vmatpush1.msra.mxu0 0.0
      %972 = vmatprep.subr.mxu0 0.0
      %973 = vmatpush1.msra.mxu0 0.0
      %974 = vmatprep.subr.mxu0 0.0
      %975 = vmatpush1.msra.mxu0 0.0
      %976 = vmatprep.subr.mxu0 0.0
      %977 = vmatpush1.msra.mxu0 0.0
      %978 = vmatprep.subr.mxu0 0.0
      %979 = vmatpush1.msra.mxu0 0.0
      %980 = vmatprep.subr.mxu0 0.0
      %981 = vmatpush1.msra.mxu0 0.0
      %982 = vmatprep.subr.mxu0 0.0
      %983 = vmatpush1.msra.mxu0 0.0
      %984 = vmatprep.subr.mxu0 0.0
      %985 = vmatpush1.msra.mxu0 0.0
      %986 = vmatprep.subr.mxu0 0.0
      %987 = vmatpush1.msra.mxu0 0.0
      %988 = vmatprep.subr.mxu0 0.0
      %989 = vmatpush1.msra.mxu0 0.0
      %990 = vmatprep.subr.mxu0 0.0
      %991 = vmatpush1.msra.mxu0 0.0
      %992 = vmatprep.subr.mxu0 0.0
      %993 = vmatpush1.msra.mxu0 0.0
      %994 = vmatprep.mubr.f32.mxu0 0.0
      %995 = vmatmul.mubr.f32.gmra.mrb[0].mxu0 %v925
      %v996 = vpop.f32.mrb[0].mxu0
      %v997 = vadd.f32 0.0, %v996
      %v998 = vpop.f32.mrb[0].mxu0
      %999 = vmatprep.mubr.f32.mxu0 0.0
      %1000 = vmatmul.mubr.f32.gmra.mrb[0].mxu0 %v928
      %v1001 = vpop.f32.mrb[0].mxu0
      %v1002 = vadd.f32 0.0, %v1001
      %v1003 = vpop.f32.mrb[0].mxu0
      %1004 = vdwg.mxu0
      %v1005 = vrcp.pop %v923
      %v1006 = vmul.f32 %v997, %v1005
      %v1007 = vmul.f32 %v1002, %v1005
      %v1008 = vld [vmem:[%s3] sm:$0xff]
      %v1009 = vld [vmem:[%s3 + $0x8] sm:$0xff]
      %v1010 = vld [vmem:[%s4] sm:$0xff]
      %v1011 = vld [vmem:[%s4 + $0x8] sm:$0xff]
      %1013 = vset.pattern.permute.xlu0 0
      %1014 = vperm.xlu0 %1013, %v1010
      %v1015 = vpop.permute.xlu0 %1014
      %1018 = vset.pattern.permute.xlu0 0
      %1019 = vperm.xlu0 %1018, %v1011
      %v1020 = vpop.permute.xlu0 %1019
      %v1023 = vsel %vm325, %v1008, 0
      %v1026 = vsel %vm325, %v1009, 0
      %1028 = vmatprep.subr.mxu0 0.0
      %1029 = vmatpush1.msra.mxu0 %v1006
      %1030 = vmatprep.subr.mxu0 0.0
      %1031 = vmatpush1.msra.mxu0 %v1007
      %1032 = vmatprep.subr.mxu0 0.0
      %1033 = vmatpush1.msra.mxu0 0.0
      %1034 = vmatprep.subr.mxu0 0.0
      %1035 = vmatpush1.msra.mxu0 0.0
      %1036 = vmatprep.subr.mxu0 0.0
      %1037 = vmatpush1.msra.mxu0 0.0
      %1038 = vmatprep.subr.mxu0 0.0
      %1039 = vmatpush1.msra.mxu0 0.0
      %1040 = vmatprep.subr.mxu0 0.0
      %1041 = vmatpush1.msra.mxu0 0.0
      %1042 = vmatprep.subr.mxu0 0.0
      %1043 = vmatpush1.msra.mxu0 0.0
      %1044 = vmatprep.subr.mxu0 0.0
      %1045 = vmatpush1.msra.mxu0 0.0
      %1046 = vmatprep.subr.mxu0 0.0
      %1047 = vmatpush1.msra.mxu0 0.0
      %1048 = vmatprep.subr.mxu0 0.0
      %1049 = vmatpush1.msra.mxu0 0.0
      %1050 = vmatprep.subr.mxu0 0.0
      %1051 = vmatpush1.msra.mxu0 0.0
      %1052 = vmatprep.subr.mxu0 0.0
      %1053 = vmatpush1.msra.mxu0 0.0
      %1054 = vmatprep.subr.mxu0 0.0
      %1055 = vmatpush1.msra.mxu0 0.0
      %1056 = vmatprep.subr.mxu0 0.0
      %1057 = vmatpush1.msra.mxu0 0.0
      %1058 = vmatprep.subr.mxu0 0.0
      %1059 = vmatpush1.msra.mxu0 0.0
      %1060 = vmatprep.subr.mxu0 0.0
      %1061 = vmatpush1.msra.mxu0 0.0
      %1062 = vmatprep.subr.mxu0 0.0
      %1063 = vmatpush1.msra.mxu0 0.0
      %1064 = vmatprep.subr.mxu0 0.0
      %1065 = vmatpush1.msra.mxu0 0.0
      %1066 = vmatprep.subr.mxu0 0.0
      %1067 = vmatpush1.msra.mxu0 0.0
      %1068 = vmatprep.subr.mxu0 0.0
      %1069 = vmatpush1.msra.mxu0 0.0
      %1070 = vmatprep.subr.mxu0 0.0
      %1071 = vmatpush1.msra.mxu0 0.0
      %1072 = vmatprep.subr.mxu0 0.0
      %1073 = vmatpush1.msra.mxu0 0.0
      %1074 = vmatprep.subr.mxu0 0.0
      %1075 = vmatpush1.msra.mxu0 0.0
      %1076 = vmatprep.subr.mxu0 0.0
      %1077 = vmatpush1.msra.mxu0 0.0
      %1078 = vmatprep.subr.mxu0 0.0
      %1079 = vmatpush1.msra.mxu0 0.0
      %1080 = vmatprep.subr.mxu0 0.0
      %1081 = vmatpush1.msra.mxu0 0.0
      %1082 = vmatprep.subr.mxu0 0.0
      %1083 = vmatpush1.msra.mxu0 0.0
      %1084 = vmatprep.subr.mxu0 0.0
      %1085 = vmatpush1.msra.mxu0 0.0
      %1086 = vmatprep.subr.mxu0 0.0
      %1087 = vmatpush1.msra.mxu0 0.0
      %1088 = vmatprep.subr.mxu0 0.0
      %1089 = vmatpush1.msra.mxu0 0.0
      %1090 = vmatprep.subr.mxu0 0.0
      %1091 = vmatpush1.msra.mxu0 0.0
      %1092 = vmatprep.mubr.f32.mxu0 0.0
      %1093 = vmatmul.mubr.f32.gmra.mrb[0].mxu0 %v1023
      %v1094 = vpop.f32.mrb[0].mxu0
      %v1095 = vadd.f32 %v1015, %v1094
      %v1096 = vpop.f32.mrb[0].mxu0
      %1097 = vmatprep.mubr.f32.mxu0 0.0
      %1098 = vmatmul.mubr.f32.gmra.mrb[0].mxu0 %v1026
      %v1099 = vpop.f32.mrb[0].mxu0
      %v1100 = vadd.f32 %v1020, %v1099
      %v1101 = vpop.f32.mrb[0].mxu0
      %1102 = vdwg.mxu0
      %v1103 = vadd.f32 %v306, %v1095
      %v1104 = vadd.f32 %v307, %v1100
      %1105 = vst.msk [vmem:[%s305] sm:$0xff] %vm308, %v1103
      %1106 = vst.msk [vmem:[%s305 + $0x8] sm:$0xff] %vm308, %v1104
      %p1107 = scmp.lt.s32.totalorder %s19, 1
      %s1108 = scalar_select %p1107, %s19, 1
      %s1109 = smul.addr %s1108, 2
      %s1110 = smul.addr %s1109, 8
      %s1111 = scalar_lea.vmem %s8, %s1110
      // Predicated region
      $region53: #{attention_block_forward.1} parent=51 // pred_check
        %p1112 = pneg %p210
      $region54: #{attention_block_forward.1} parent=51 // pred_check_branch
        %1114 = sbr.rel (%p1112) target = $region56
      $region55: #{attention_block_forward.1} parent=51 // pred_region
        _
      $region56: #{attention_block_forward.1} parent=51 // pred_fallthru
        _
    $region52: #{attention_block_forward.1} parent=5 // pred_fallthru
      _
    %p1115 = scmp.le.s32.totalorder 2, %s14
    // Predicated region
    $region57: #{attention_block_forward.1} parent=5 // pred_check
      %p1116 = pneg %p1115
    $region58: #{attention_block_forward.1} parent=5 // pred_check_branch
      %1118 = sbr.rel (%p1116) target = $region60
    $region59: #{attention_block_forward.1} parent=5 // pred_region
      %s1119 = ssub.s32 %s14, 2
      // Predicated region
      $region61: #{attention_block_forward.1} parent=59 // pred_check
        %p1120 = pneg %p216
      $region62: #{attention_block_forward.1} parent=59 // pred_check_branch
        %1122 = sbr.rel (%p1120) target = $region64
      $region63: #{attention_block_forward.1} parent=59 // pred_region
        %p1123 = scmp.lt.s32.totalorder %s20, 1
        %s1124 = scalar_select %p1123, %s20, 1
        %s1125 = smul.addr %s1124, 2
        %s1126 = smul.addr %s1125, 8
        %s1127 = scalar_lea.vmem %s8, %s1126
      $region64: #{attention_block_forward.1} parent=59 // pred_fallthru
        _
    $region60: #{attention_block_forward.1} parent=5 // pred_fallthru
      _
  $region6: #{attention_block_forward.1} parent=0 // loop_footer
    %s18 = sadd.s32 1, %s14
  $region7: #{attention_block_forward.1} parent=0 // loop_footer_branch
    %13 = sbr.rel target = $region3
  $region8: #{attention_block_forward.1} parent=0 // loop_exit
    _

</llo_original>
